<compile_context>
chip_gen: v7x
topology: tpu7x:2x2x1
jax: 0.10.0
libtpu: 0.0.40
codegen_flags: <defaults>
</compile_context>

<pallas_src>
import jax
import jax.numpy as jnp
from jax import lax
from jax.experimental import pallas as pl
from jax.experimental.pallas import tpu as pltpu


def _linear_kernel_nk1(x_ref, w_ref, b_ref, o_ref):
    # Single-K-block fast path: no accumulator scratch, no guards.
    # x_ref: (tile_b, K)   w_ref: (tn, K)   b_ref: (1, tn)   o_ref: (tile_b, tn)
    acc = lax.dot_general(
        x_ref[...], w_ref[...],
        dimension_numbers=(((1,), (1,)), ((), ())),   # x @ w.T on the MXU
        preferred_element_type=jnp.float32,
    )
    o_ref[...] = (acc + b_ref[...]).astype(o_ref.dtype)


def _linear_kernel_multi_k(x_ref, w_ref, b_ref, o_ref, acc_ref):
    # x_ref  : (tile_b, tk)        VMEM
    # w_ref  : (tn, tk)            VMEM  (PyTorch layout: rows = out features)
    # b_ref  : (1, tn)             VMEM
    # o_ref  : (tile_b, tn)        VMEM
    # acc_ref: (tile_b, tn) f32    VMEM scratch, persists across the K axis
    k = pl.program_id(2)

    @pl.when(k == 0)
    def _():
        acc_ref[...] = jnp.zeros_like(acc_ref)

    acc_ref[...] += lax.dot_general(
        x_ref[...], w_ref[...],
        dimension_numbers=(((1,), (1,)), ((), ())),
        preferred_element_type=jnp.float32,
    )

    @pl.when(k == pl.num_programs(2) - 1)
    def _():
        o_ref[...] = (acc_ref[...] + b_ref[...]).astype(o_ref.dtype)


def _pick_feature_tile(dim):
    # Largest MXU-friendly tile that exactly divides the dim (256-granular
    # preferred for v6e/v7x 2x256x256 MXUs); otherwise keep the dim whole
    # (a full-dim block always satisfies the (8,128) rule).
    for cand in (512, 256, 128):
        if dim > cand and dim % cand == 0:
            return cand
    return dim


def _vmem_cap_bytes():
    try:
        return int(0.75 * pltpu.get_tpu_info().vmem_capacity_bytes)
    except Exception:
        return 48 * 2**20   # conservative: 75% of v7x's 64 MiB per TensorCore


def location_projection(x, weight, bias, *, tile_b=None):
    """y = x @ weight.T + bias  (exactly nn.Linear forward).

    x:      (B, in_dim)
    weight: (out_dim, in_dim)  -- PyTorch nn.Linear convention (NOT transposed)
    bias:   (out_dim,)
    """
    B, in_dim = x.shape
    out_dim, in_dim_w = weight.shape
    assert in_dim == in_dim_w, (in_dim, in_dim_w)
    assert bias.shape == (out_dim,), bias.shape

    x_item = jnp.dtype(x.dtype).itemsize
    w_item = jnp.dtype(weight.dtype).itemsize
    sublane = {4: 8, 2: 16, 1: 32}.get(x_item, 8)

    # --- Lane-dense output: pad out-features up to 128 when narrower. ---
    out_pad = out_dim
    if out_dim < 128:
        out_pad = 128
        weight = jnp.pad(weight, ((0, out_pad - out_dim), (0, 0)))
        bias = jnp.pad(bias, (0, out_pad - out_dim))

    # --- Batch tiling: single tile unless B is genuinely large. ---
    if tile_b is None:
        if B <= 512:
            tile_b = B            # nb = 1: weight streamed from HBM once
        else:
            tile_b = 512          # 256-multiple, above v6e roofline knee
    else:
        assert tile_b == B or tile_b % sublane == 0, (
            "tile_b must equal B or be a multiple of the sublane count")

    tk = _pick_feature_tile(in_dim)
    tn = _pick_feature_tile(out_pad)

    nb = pl.cdiv(B, tile_b)
    nn_tiles = pl.cdiv(out_pad, tn)
    nk = pl.cdiv(in_dim, tk)

    b2 = bias.reshape(1, out_pad)   # keep bias 2-D for TPU layout

    cost = pl.CostEstimate(
        flops=2 * B * in_dim * out_pad,
        transcendentals=0,
        bytes_accessed=(B * in_dim + B * out_pad) * x_item
        + (out_pad * in_dim + out_pad) * w_item,
    )

    if nk == 1:
        # Fast path (canonical shape): 2-D grid, no scratch, direct store.
        kernel = _linear_kernel_nk1
        grid = (nb, nn_tiles)
        in_specs = [
            pl.BlockSpec((tile_b, in_dim), lambda i, j: (i, 0)),
            pl.BlockSpec((tn, in_dim), lambda i, j: (j, 0)),
            pl.BlockSpec((1, tn), lambda i, j: (0, j)),
        ]
        out_specs = pl.BlockSpec((tile_b, tn), lambda i, j: (i, j))
        scratch_shapes = []
        dim_sem = ("parallel", "parallel")
        vmem_need = 2 * (tile_b * in_dim + tile_b * tn) * x_item \
            + 2 * (tn * in_dim + tn) * w_item
    else:
        # Reduction tiling with a resident f32 accumulator across the K axis.
        kernel = _linear_kernel_multi_k
        grid = (nb, nn_tiles, nk)
        in_specs = [
            pl.BlockSpec((tile_b, tk), lambda i, j, k: (i, k)),
            # TODO(synk): if xprof shows the weight DMA exposed for tiny
            # per-step compute, add pipeline_mode=pl.Buffered(3) here.
            pl.BlockSpec((tn, tk), lambda i, j, k: (j, k)),
            pl.BlockSpec((1, tn), lambda i, j, k: (0, j)),
        ]
        out_specs = pl.BlockSpec((tile_b, tn), lambda i, j, k: (i, j))
        scratch_shapes = [pltpu.VMEM((tile_b, tn), jnp.float32)]
        dim_sem = ("parallel", "parallel", "arbitrary")
        vmem_need = 2 * (tile_b * tk + tile_b * tn) * x_item \
            + 2 * (tn * tk + tn) * w_item \
            + tile_b * tn * 4

    vmem_limit = int(min(_vmem_cap_bytes(), max(2 * vmem_need, 8 * 2**20)))

    y = pl.pallas_call(
        kernel,
        out_shape=jax.ShapeDtypeStruct((B, out_pad), x.dtype),
        grid=grid,
        in_specs=in_specs,
        out_specs=out_specs,
        scratch_shapes=scratch_shapes,
        compiler_params=pltpu.CompilerParams(
            dimension_semantics=dim_sem,
            vmem_limit_bytes=vmem_limit,
        ),
        cost_estimate=cost,
    )(x, weight, b2)

    if out_pad != out_dim:
        y = y[:, :out_dim]
    return y


def init_linear_params(key, in_dim, out_dim, dtype=jnp.float32):
    """Deterministic init mimicking nn.Linear's uniform(-1/sqrt(in), 1/sqrt(in))."""
    kw, kb = jax.random.split(key)
    bound = 1.0 / (in_dim ** 0.5)
    weight = jax.random.uniform(kw, (out_dim, in_dim), dtype, -bound, bound)
    bias = jax.random.uniform(kb, (out_dim,), dtype, -bound, bound)
    return weight, bias


if __name__ == "__main__":
    key = jax.random.PRNGKey(0)
    k_x, k_p, k_x2, k_p2 = jax.random.split(key, 4)

    # --- Case 1: the module's small shape (nk=1 fast path, padded to 128 lanes) ---
    B, in_dim, out_dim = 64, 32, 16
    x = jax.random.normal(k_x, (B, in_dim), dtype=jnp.float32)
    w, b = init_linear_params(k_p, in_dim, out_dim)
    y = jax.block_until_ready(location_projection(x, w, b))
    y_ref = x @ w.T + b
    assert y.shape == (B, out_dim)
    assert jnp.allclose(y, y_ref, atol=1e-5, rtol=1e-5)

    # --- Case 2: same shapes in bf16 end-to-end (f32 accumulation in-kernel) ---
    xb = x.astype(jnp.bfloat16)
    wb = w.astype(jnp.bfloat16)
    bb = b.astype(jnp.bfloat16)
    yb = jax.block_until_ready(location_projection(xb, wb, bb))
    assert yb.dtype == jnp.bfloat16
    assert jnp.allclose(yb.astype(jnp.float32), y_ref, atol=5e-2, rtol=5e-2)

    # --- Case 3: bigger features to exercise the multi-K reduction path ---
    B2, in2, out2 = 64, 256, 256  # -> grid (1, 2, 2) with tk = tn = 128, nb = 1
    x2 = jax.random.normal(k_x2, (B2, in2), dtype=jnp.float32)
    w2, b2 = init_linear_params(k_p2, in2, out2)
    y2 = jax.block_until_ready(location_projection(x2, w2, b2))
    y2_ref = x2 @ w2.T + b2
    assert jnp.allclose(y2, y2_ref, atol=1e-4, rtol=1e-4)

    print("KERNEL_OK")
</pallas_src>

<mosaic_0001>
module attributes {stable_mosaic.version = 11 : i64} {
  func.func @_linear_kernel_nk1(%arg0: i32, %arg1: i32, %arg2: memref<64x32xf32, #tpu.memory_space<vmem>>, %arg3: memref<128x32xf32, #tpu.memory_space<vmem>>, %arg4: memref<1x128xf32, #tpu.memory_space<vmem>>, %arg5: memref<64x128xf32, #tpu.memory_space<vmem>>) attributes {dimension_semantics = [#tpu.dimension_semantics<parallel>, #tpu.dimension_semantics<parallel>], iteration_bounds = array<i64: 1, 1>, scalar_prefetch = 0 : i64, scratch_operands = 0 : i64, tpu.core_type = #tpu.core_type<tc>, window_params = [{transform_indices = @transform_0, window_bounds = array<i64: 64, 32>}, {transform_indices = @transform_1, window_bounds = array<i64: 128, 32>}, {transform_indices = @transform_2, window_bounds = array<i64: 1, 128>}, {transform_indices = @transform_3, window_bounds = array<i64: 64, 128>}]} {
    %c0 = arith.constant 0 : index
    %c0_0 = arith.constant 0 : index
    %0 = vector.load %arg2[%c0, %c0_0] : memref<64x32xf32, #tpu.memory_space<vmem>>, vector<64x32xf32>
    %c0_1 = arith.constant 0 : index
    %c0_2 = arith.constant 0 : index
    %1 = vector.load %arg3[%c0_1, %c0_2] : memref<128x32xf32, #tpu.memory_space<vmem>>, vector<128x32xf32>
    %cst = arith.constant dense<0.000000e+00> : vector<64x128xf32>
    %2 = tpu.matmul %0, %1, %cst {dimension_numbers = #tpu.dot_dimension_numbers<[1], [1], [0], [0], [0, 0, 1, 0], [], []>} : vector<64x32xf32>, vector<128x32xf32>, vector<64x128xf32> -> vector<64x128xf32>
    %c0_3 = arith.constant 0 : index
    %c0_4 = arith.constant 0 : index
    %3 = vector.load %arg4[%c0_3, %c0_4] : memref<1x128xf32, #tpu.memory_space<vmem>>, vector<1x128xf32>
    %4 = vector.broadcast %3 : vector<1x128xf32> to vector<64x128xf32>
    %5 = arith.addf %2, %4 : vector<64x128xf32>
    %c0_5 = arith.constant 0 : index
    %c0_6 = arith.constant 0 : index
    %6 = vector.load %arg5[%c0_5, %c0_6] : memref<64x128xf32, #tpu.memory_space<vmem>>, vector<64x128xf32>
    tpu.vector_store %arg5[%c0_5, %c0_6], %5 {strides = array<i32>} : memref<64x128xf32, #tpu.memory_space<vmem>>, vector<64x128xf32>,
    return
  }
  func.func @transform_0(%arg0: i32, %arg1: i32) -> (i32, i32) {
    %c0_i32 = arith.constant 0 : i32
    %c0_i32_0 = arith.constant 0 : i32
    return %arg0, %c0_i32 : i32, i32
  }
  func.func @transform_1(%arg0: i32, %arg1: i32) -> (i32, i32) {
    %c0_i32 = arith.constant 0 : i32
    %c0_i32_0 = arith.constant 0 : i32
    return %arg1, %c0_i32 : i32, i32
  }
  func.func @transform_2(%arg0: i32, %arg1: i32) -> (i32, i32) {
    %c0_i32 = arith.constant 0 : i32
    %c0_i32_0 = arith.constant 0 : i32
    return %c0_i32, %arg1 : i32, i32
  }
  func.func @transform_3(%arg0: i32, %arg1: i32) -> (i32, i32) {
    %c0_i32 = arith.constant 0 : i32
    return %arg0, %arg1 : i32, i32
  }
}

</mosaic_0001>

<llo_original>
// kernel: tpu_custom_call.1
$region0: #{tpu_custom_call.1}
  #allocation0 [shape = 'u32[]', space=smem, size = 0x4, offset = 0x4, fixed_abs, tag = 'smem constant byte address 0x4 - core index']
  #allocation1 [shape = 'u32[144,128]{1,0:T(1,128)}', space=vmem, size = 0x12000, scoped, tag = 'internal scratch']
  %s0 = inlined_call_operand.vmem [shape: f32[64,32], index: 0, kind: input, shape index: {}]
  %s1 = inlined_call_operand.vmem [shape: f32[128,32], index: 1, kind: input, shape index: {}]
  %s2 = inlined_call_operand.vmem [shape: f32[1,128], index: 2, kind: input, shape index: {}]
  %s3 = inlined_call_operand.hbm [shape: f32[64,128], index: 3, kind: output, shape index: {}]
  %s4 = sld [smem:[#allocation0]]
  $region22: #{tpu_custom_call.1} parent=0
    _
  %s6 = ssub.s32 1, %s4
  %s7 = scalar_select 0, %s6, %s4
  $region1: #{tpu_custom_call.1} parent=0
    #allocation2 [shape = 'u8[32768]{0}', space=vmem, size = 0x8000, scoped, tag = 'output window, operand 0, single buffered']
    #allocation3 [shape = 's32[1]{0}', space=sflag, size = 0x4, scoped, tag = 'scoped memory for tpu_custom_call.1']
    %8 = vsyncpa [#allocation3], 0
    // Predicated region
    $region2: #{tpu_custom_call.1} parent=1 // pred_check
      _
    $region3: #{tpu_custom_call.1} parent=1 // pred_check_branch
      %10 = sbr.rel (0) target = $region5
    $region4: #{tpu_custom_call.1} parent=1 // pred_region
      _
    $region5: #{tpu_custom_call.1} parent=1 // pred_fallthru
      _
    // Predicated region
    $region6: #{tpu_custom_call.1} parent=1 // pred_check
      _
    $region7: #{tpu_custom_call.1} parent=1 // pred_check_branch
      %12 = sbr.rel (0) target = $region9
    $region8: #{tpu_custom_call.1} parent=1 // pred_region
      _
    $region9: #{tpu_custom_call.1} parent=1 // pred_fallthru
      _
    // Predicated region
    $region10: #{tpu_custom_call.1} parent=1 // pred_check
      _
    $region11: #{tpu_custom_call.1} parent=1 // pred_check_branch
      %14 = sbr.rel (0) target = $region13
    $region12: #{tpu_custom_call.1} parent=1 // pred_region
      _
    $region13: #{tpu_custom_call.1} parent=1 // pred_fallthru
      _
    %v15 = vld [vmem:[%s0] sm:$0xff]
    %v16 = vld [vmem:[%s0 + $0x8] sm:$0xff]
    %v17 = vld [vmem:[%s0 + $0x10] sm:$0xff]
    %v18 = vld [vmem:[%s0 + $0x18] sm:$0xff]
    %v19 = vld [vmem:[%s0 + $0x20] sm:$0xff]
    %v20 = vld [vmem:[%s0 + $0x28] sm:$0xff]
    %v21 = vld [vmem:[%s0 + $0x30] sm:$0xff]
    %v22 = vld [vmem:[%s0 + $0x38] sm:$0xff]
    %v23 = vld [vmem:[%s1] sm:$0xff]
    %v24 = vld [vmem:[%s1 + $0x8] sm:$0xff]
    %v25 = vld [vmem:[%s1 + $0x10] sm:$0xff]
    %v26 = vld [vmem:[%s1 + $0x18] sm:$0xff]
    %v27 = vld [vmem:[%s1 + $0x20] sm:$0xff]
    %v28 = vld [vmem:[%s1 + $0x28] sm:$0xff]
    %v29 = vld [vmem:[%s1 + $0x30] sm:$0xff]
    %v30 = vld [vmem:[%s1 + $0x38] sm:$0xff]
    %v31 = vld [vmem:[%s1 + $0x40] sm:$0xff]
    %v32 = vld [vmem:[%s1 + $0x48] sm:$0xff]
    %v33 = vld [vmem:[%s1 + $0x50] sm:$0xff]
    %v34 = vld [vmem:[%s1 + $0x58] sm:$0xff]
    %v35 = vld [vmem:[%s1 + $0x60] sm:$0xff]
    %v36 = vld [vmem:[%s1 + $0x68] sm:$0xff]
    %v37 = vld [vmem:[%s1 + $0x70] sm:$0xff]
    %v38 = vld [vmem:[%s1 + $0x78] sm:$0xff]
    %v39 = vld [vmem:[%s2] sm:$0x1]
    %v41 = vlaneseq
    %v42 = vshrl.u32 %v41, 7
    %v43 = vsub.s32 0, %v42
    %v44 = vrot.slane %v39, %v43
    %vm46 = vcmask 261120
    %v48 = vsel %vm46, %v15, 0
    %v51 = vsel %vm46, %v16, 0
    %v54 = vsel %vm46, %v17, 0
    %v57 = vsel %vm46, %v18, 0
    %v60 = vsel %vm46, %v19, 0
    %v63 = vsel %vm46, %v20, 0
    %v66 = vsel %vm46, %v21, 0
    %v69 = vsel %vm46, %v22, 0
    %v72 = vsel %vm46, %v23, 0
    %v75 = vsel %vm46, %v24, 0
    %v78 = vsel %vm46, %v25, 0
    %v81 = vsel %vm46, %v26, 0
    %v84 = vsel %vm46, %v27, 0
    %v87 = vsel %vm46, %v28, 0
    %v90 = vsel %vm46, %v29, 0
    %v93 = vsel %vm46, %v30, 0
    %v96 = vsel %vm46, %v31, 0
    %v99 = vsel %vm46, %v32, 0
    %v102 = vsel %vm46, %v33, 0
    %v105 = vsel %vm46, %v34, 0
    %v108 = vsel %vm46, %v35, 0
    %v111 = vsel %vm46, %v36, 0
    %v114 = vsel %vm46, %v37, 0
    %v117 = vsel %vm46, %v38, 0
    %119 = vmatprep.subr.mxu0 0.0
    %120 = vmatpush1.xpose.msra.mxu0 %v72
    %121 = vmatprep.subr.mxu0 0.0
    %122 = vmatpush1.xpose.msra.mxu0 %v75
    %123 = vmatprep.subr.mxu0 0.0
    %124 = vmatpush1.xpose.msra.mxu0 %v78
    %125 = vmatprep.subr.mxu0 0.0
    %126 = vmatpush1.xpose.msra.mxu0 %v81
    %127 = vmatprep.subr.mxu0 0.0
    %128 = vmatpush1.xpose.msra.mxu0 %v84
    %129 = vmatprep.subr.mxu0 0.0
    %130 = vmatpush1.xpose.msra.mxu0 %v87
    %131 = vmatprep.subr.mxu0 0.0
    %132 = vmatpush1.xpose.msra.mxu0 %v90
    %133 = vmatprep.subr.mxu0 0.0
    %134 = vmatpush1.xpose.msra.mxu0 %v93
    %135 = vmatprep.subr.mxu0 0.0
    %136 = vmatpush1.xpose.msra.mxu0 %v96
    %137 = vmatprep.subr.mxu0 0.0
    %138 = vmatpush1.xpose.msra.mxu0 %v99
    %139 = vmatprep.subr.mxu0 0.0
    %140 = vmatpush1.xpose.msra.mxu0 %v102
    %141 = vmatprep.subr.mxu0 0.0
    %142 = vmatpush1.xpose.msra.mxu0 %v105
    %143 = vmatprep.subr.mxu0 0.0
    %144 = vmatpush1.xpose.msra.mxu0 %v108
    %145 = vmatprep.subr.mxu0 0.0
    %146 = vmatpush1.xpose.msra.mxu0 %v111
    %147 = vmatprep.subr.mxu0 0.0
    %148 = vmatpush1.xpose.msra.mxu0 %v114
    %149 = vmatprep.subr.mxu0 0.0
    %150 = vmatpush1.xpose.msra.mxu0 %v117
    %151 = vmatprep.subr.mxu0 0.0
    %152 = vmatpush1.xpose.msra.mxu0 0.0
    %153 = vmatprep.subr.mxu0 0.0
    %154 = vmatpush1.xpose.msra.mxu0 0.0
    %155 = vmatprep.subr.mxu0 0.0
    %156 = vmatpush1.xpose.msra.mxu0 0.0
    %157 = vmatprep.subr.mxu0 0.0
    %158 = vmatpush1.xpose.msra.mxu0 0.0
    %159 = vmatprep.subr.mxu0 0.0
    %160 = vmatpush1.xpose.msra.mxu0 0.0
    %161 = vmatprep.subr.mxu0 0.0
    %162 = vmatpush1.xpose.msra.mxu0 0.0
    %163 = vmatprep.subr.mxu0 0.0
    %164 = vmatpush1.xpose.msra.mxu0 0.0
    %165 = vmatprep.subr.mxu0 0.0
    %166 = vmatpush1.xpose.msra.mxu0 0.0
    %167 = vmatprep.subr.mxu0 0.0
    %168 = vmatpush1.xpose.msra.mxu0 0.0
    %169 = vmatprep.subr.mxu0 0.0
    %170 = vmatpush1.xpose.msra.mxu0 0.0
    %171 = vmatprep.subr.mxu0 0.0
    %172 = vmatpush1.xpose.msra.mxu0 0.0
    %173 = vmatprep.subr.mxu0 0.0
    %174 = vmatpush1.xpose.msra.mxu0 0.0
    %175 = vmatprep.subr.mxu0 0.0
    %176 = vmatpush1.xpose.msra.mxu0 0.0
    %177 = vmatprep.subr.mxu0 0.0
    %178 = vmatpush1.xpose.msra.mxu0 0.0
    %179 = vmatprep.subr.mxu0 0.0
    %180 = vmatpush1.xpose.msra.mxu0 0.0
    %181 = vmatprep.subr.mxu0 0.0
    %182 = vmatpush1.xpose.msra.mxu0 0.0
    %183 = vmatprep.mubr.f32.mxu0 0.0
    %184 = vmatmul.mubr.f32.gmra.mrb[0].mxu0 %v48
    %v185 = vpop.f32.mrb[0].mxu0
    %v186 = vadd.f32 %v44, %v185
    %v187 = vpop.f32.mrb[0].mxu0
    %188 = vmatprep.mubr.f32.mxu0 0.0
    %189 = vmatmul.mubr.f32.gmra.mrb[0].mxu0 %v51
    %v190 = vpop.f32.mrb[0].mxu0
    %v191 = vadd.f32 %v44, %v190
    %v192 = vpop.f32.mrb[0].mxu0
    %193 = vmatprep.mubr.f32.mxu0 0.0
    %194 = vmatmul.mubr.f32.gmra.mrb[0].mxu0 %v54
    %v195 = vpop.f32.mrb[0].mxu0
    %v196 = vadd.f32 %v44, %v195
    %v197 = vpop.f32.mrb[0].mxu0
    %198 = vmatprep.mubr.f32.mxu0 0.0
    %199 = vmatmul.mubr.f32.gmra.mrb[0].mxu0 %v57
    %v200 = vpop.f32.mrb[0].mxu0
    %v201 = vadd.f32 %v44, %v200
    %v202 = vpop.f32.mrb[0].mxu0
    %203 = vmatprep.mubr.f32.mxu0 0.0
    %204 = vmatmul.mubr.f32.gmra.mrb[0].mxu0 %v60
    %v205 = vpop.f32.mrb[0].mxu0
    %v206 = vadd.f32 %v44, %v205
    %v207 = vpop.f32.mrb[0].mxu0
    %208 = vmatprep.mubr.f32.mxu0 0.0
    %209 = vmatmul.mubr.f32.gmra.mrb[0].mxu0 %v63
    %v210 = vpop.f32.mrb[0].mxu0
    %v211 = vadd.f32 %v44, %v210
    %v212 = vpop.f32.mrb[0].mxu0
    %213 = vmatprep.mubr.f32.mxu0 0.0
    %214 = vmatmul.mubr.f32.gmra.mrb[0].mxu0 %v66
    %v215 = vpop.f32.mrb[0].mxu0
    %v216 = vadd.f32 %v44, %v215
    %v217 = vpop.f32.mrb[0].mxu0
    %218 = vmatprep.mubr.f32.mxu0 0.0
    %219 = vmatmul.mubr.f32.gmra.mrb[0].mxu0 %v69
    %v220 = vpop.f32.mrb[0].mxu0
    %v221 = vadd.f32 %v44, %v220
    %v222 = vpop.f32.mrb[0].mxu0
    %223 = vdwg.mxu0
    %224 = vst [vmem:[#allocation2] sm:$0xff] %v186
    %225 = vst [vmem:[#allocation2 + $0x8] sm:$0xff] %v191
    %226 = vst [vmem:[#allocation2 + $0x10] sm:$0xff] %v196
    %227 = vst [vmem:[#allocation2 + $0x18] sm:$0xff] %v201
    %228 = vst [vmem:[#allocation2 + $0x20] sm:$0xff] %v206
    %229 = vst [vmem:[#allocation2 + $0x28] sm:$0xff] %v211
    %230 = vst [vmem:[#allocation2 + $0x30] sm:$0xff] %v216
    %231 = vst [vmem:[#allocation2 + $0x38] sm:$0xff] %v221
    // Predicated region
    $region14: #{tpu_custom_call.1} parent=1 // pred_check
      _
    $region15: #{tpu_custom_call.1} parent=1 // pred_check_branch
      %233 = sbr.rel (0) target = $region17
    $region16: #{tpu_custom_call.1} parent=1 // pred_region
      %s235 = ssub.s32 1024, 1024
      %236 = vsyncadd [#allocation3], %s235
      %s237 = sshll.u32 [#allocation2], 4
      %s238 = int_to_ptr.vmem [resolvable:$true] %s237
      %243 = dma.vmem_to_hbm [thread:$0]  %s238, 1024, %s3, [#allocation3], 128, 128, 8
    $region17: #{tpu_custom_call.1} parent=1 // pred_fallthru
      _
    // Predicated region
    $region18: #{tpu_custom_call.1} parent=1 // pred_check
      _
    $region19: #{tpu_custom_call.1} parent=1 // pred_check_branch
      %245 = sbr.rel (0) target = $region21
    $region20: #{tpu_custom_call.1} parent=1 // pred_region
      %246 = dma.done [#allocation3], 1024
    $region21: #{tpu_custom_call.1} parent=1 // pred_fallthru
      _
    %247 = vsyncpa [#allocation3], 1

</llo_original>
